<compile_context>
chip_gen: v7x
topology: tpu7x:2x2x1
jax: 0.10.0
libtpu: 0.0.40
codegen_flags: <defaults>
</compile_context>

<pallas_src>
import functools
import math

import jax
import jax.numpy as jnp
from jax.experimental import pallas as pl
from jax.experimental.pallas import tpu as pltpu

NEG_SLOPE = 0.01            # torch.nn.functional.leaky_relu default
LANE = 128                  # TPU lane width; skinny dims are zero-padded to it
COMPUTE_DTYPE = jnp.bfloat16


def _leaky_relu(x):
    return jnp.where(x > 0, x, NEG_SLOPE * x)


def _padded_feature_dim(S, F):
    """Smallest F_pad >= F such that S * F_pad is a multiple of 128 (so the
    flattened (B, S*F_pad) input blocks are fully lane-dense).  Skip the
    padding if it would more than double the feature dim (byte cost > benefit)."""
    step = LANE // math.gcd(S, LANE)
    F_pad = pl.cdiv(F, step) * step
    return F_pad if F_pad <= 2 * F else F


# -----------------------------------------------------------------------------
# Kernel: two skinny contractions over the flattened sequences (mean-pool,
# encoder linear, torch.cat and fc1 all folded into the weights) + leaky_relu
# + one 128x128 matmul (fc2) + leaky_relu, lane-dense store.
# -----------------------------------------------------------------------------
def seq2func_kernel(
    cell_ref,    # (tm, Sc*Fc_pad)   bf16 flattened cell sequence tile
    smiles_ref,  # (tm, Ss*Fs_pad)   bf16 flattened SMILES sequence tile
    wc_ref,      # (Sc*Fc_pad, 128)  bf16 fused cell weight (mean+enc+fc1)
    ws_ref,      # (Ss*Fs_pad, 128)  bf16 fused smiles weight (mean+enc+fc1)
    b1_ref,      # (1, 128)          f32  fused bias [bc@w1c + bs@w1s + b1 | 0]
    w2_ref,      # (128, 128)        bf16 fc2 weight (zero-padded)
    b2_ref,      # (1, 128)          f32  [b2 | 0]
    out_ref,     # (tm, 128)         f32  lane-dense output tile
):
    h = (
        jnp.dot(cell_ref[...], wc_ref[...], preferred_element_type=jnp.float32)
        + jnp.dot(smiles_ref[...], ws_ref[...], preferred_element_type=jnp.float32)
        + b1_ref[...]
    )
    h = _leaky_relu(h)
    # dropout: eval-mode identity (deterministic forward)
    o = (
        jnp.dot(h.astype(COMPUTE_DTYPE), w2_ref[...], preferred_element_type=jnp.float32)
        + b2_ref[...]
    )
    out_ref[...] = _leaky_relu(o)


# -----------------------------------------------------------------------------
# Parameter preparation (done once).  All padding lanes/rows are exact zeros
# and leaky_relu(0) = 0, so the fused math is equivalent to the reference up
# to matmul reassociation / bf16 rounding.
# -----------------------------------------------------------------------------
def prepare_fused_params(params, Sc, Fc, Ss, Fs, Dc, Ds, H, O):
    wc, bc, ws, bs, w1c, w1s, b1, w2, b2 = params
    assert Dc + Ds <= LANE and H <= LANE and O <= LANE
    f32 = jnp.float32

    # 1) Block-diagonal encoder projection padded to 128 lanes.  Output lanes
    #    are already [cell_enc | smiles_enc | 0] == torch.cat(dim=1).
    wc_pad = jnp.zeros((Fc, LANE), f32).at[:, :Dc].set(wc)
    ws_pad = jnp.zeros((Fs, LANE), f32).at[:, Dc:Dc + Ds].set(ws)
    be_pad = (
        jnp.zeros((1, LANE), f32).at[:, :Dc].set(bc).at[:, Dc:Dc + Ds].set(bs)
    )

    # 2) fc1 over the concat axis, padded to 128x128.
    w1_pad = (
        jnp.zeros((LANE, LANE), f32)
        .at[:Dc, :H].set(w1c)
        .at[Dc:Dc + Ds, :H].set(w1s)
    )
    b1_pad = jnp.zeros((1, LANE), f32).at[:, :H].set(b1)

    # 3) Fold fc1 into the encoder weights (no nonlinearity in between).
    wc_f = wc_pad @ w1_pad                 # (Fc, 128), useful cols [0:H]
    ws_f = ws_pad @ w1_pad                 # (Fs, 128)
    b1_f = be_pad @ w1_pad + b1_pad        # (1, 128)

    # 4) Fold the sequence mean-pool into the same matmul: tile wc_f/Sc along
    #    the flattened (S, F_pad) contraction axis (padded feature rows = 0).
    Fc_pad = _padded_feature_dim(Sc, Fc)
    Fs_pad = _padded_feature_dim(Ss, Fs)
    wc_t = (
        jnp.zeros((Sc, Fc_pad, LANE), f32).at[:, :Fc, :].set(wc_f / Sc)
    ).reshape(Sc * Fc_pad, LANE)
    ws_t = (
        jnp.zeros((Ss, Fs_pad, LANE), f32).at[:, :Fs, :].set(ws_f / Ss)
    ).reshape(Ss * Fs_pad, LANE)

    # 5) fc2 padded to 128x128.
    w2_pad = jnp.zeros((LANE, LANE), f32).at[:H, :O].set(w2)
    b2_pad = jnp.zeros((1, LANE), f32).at[:, :O].set(b2)

    return dict(
        wc=wc_t.astype(COMPUTE_DTYPE),
        ws=ws_t.astype(COMPUTE_DTYPE),
        b1=b1_f,                          # biases stay f32 (added post-accumulate)
        w2=w2_pad.astype(COMPUTE_DTYPE),
        b2=b2_pad,
        Fc_pad=Fc_pad,
        Fs_pad=Fs_pad,
    )


# -----------------------------------------------------------------------------
# Wrapper
# -----------------------------------------------------------------------------
def _flatten_seq(x, F_pad):
    """(B, S, F) f32 -> (B, S*F_pad) bf16, zero-padding each step's features."""
    B, S, F = x.shape
    if F_pad != F:
        x = jnp.pad(x, ((0, 0), (0, 0), (0, F_pad - F)))
    return x.reshape(B, S * F_pad).astype(COMPUTE_DTYPE)


def seq2func_forward(cell_src, smiles_src, fused, out_dim, *, tm=256):
    """cell_src: (B, Sc, Fc) f32, smiles_src: (B, Ss, Fs) f32 -> (B, out_dim) f32."""
    B = cell_src.shape[0]
    Fc_pad, Fs_pad = fused["Fc_pad"], fused["Fs_pad"]

    cell_flat = _flatten_seq(cell_src, Fc_pad)      # (B, Sc*Fc_pad) bf16
    smiles_flat = _flatten_seq(smiles_src, Fs_pad)  # (B, Ss*Fs_pad) bf16
    Kc, Ks = cell_flat.shape[1], smiles_flat.shape[1]

    # Batch tile: multiple of 8, capped at 256 (bigger buys nothing here and
    # risks vreg spill), and clamped so the grid has >=2 steps when B allows
    # (lets dimension_semantics=("parallel",) use both v7x TensorCores).
    tm = max(8, (min(tm, 256) // 8) * 8)
    two_step = max(8, pl.cdiv(B, 2 * 8) * 8)        # ceil(B/2) rounded up to 8
    tm = min(tm, two_step)
    Bp = pl.cdiv(B, tm) * tm
    if Bp != B:  # pad batch to a multiple of the tile; sliced off below
        cell_flat = jnp.pad(cell_flat, ((0, Bp - B), (0, 0)))
        smiles_flat = jnp.pad(smiles_flat, ((0, Bp - B), (0, 0)))

    operands = (cell_flat, smiles_flat,
                fused["wc"], fused["ws"], fused["b1"], fused["w2"], fused["b2"])

    in_specs = [
        # batch-tiled, lane-dense flattened sequence inputs (pipelined)
        pl.BlockSpec((tm, Kc), lambda i: (i, 0)),
        pl.BlockSpec((tm, Ks), lambda i: (i, 0)),
        # constant-index weights: resident in VMEM, single-buffered
        pl.BlockSpec(fused["wc"].shape, lambda i: (0, 0), pipeline_mode=pl.Buffered(1)),
        pl.BlockSpec(fused["ws"].shape, lambda i: (0, 0), pipeline_mode=pl.Buffered(1)),
        pl.BlockSpec(fused["b1"].shape, lambda i: (0, 0), pipeline_mode=pl.Buffered(1)),
        pl.BlockSpec(fused["w2"].shape, lambda i: (0, 0), pipeline_mode=pl.Buffered(1)),
        pl.BlockSpec(fused["b2"].shape, lambda i: (0, 0), pipeline_mode=pl.Buffered(1)),
    ]
    out_specs = pl.BlockSpec((tm, LANE), lambda i: (i, 0))

    flops = 2 * Bp * (Kc * LANE + Ks * LANE + LANE * LANE)
    bytes_accessed = (
        sum(int(o.size) * o.dtype.itemsize for o in operands) + Bp * LANE * 4
    )

    out_full = pl.pallas_call(
        seq2func_kernel,
        out_shape=jax.ShapeDtypeStruct((Bp, LANE), jnp.float32),
        grid=(Bp // tm,),
        in_specs=in_specs,
        out_specs=out_specs,
        compiler_params=pltpu.CompilerParams(
            dimension_semantics=("parallel",),  # batch tiles across v7x TCs
        ),
        cost_estimate=pl.CostEstimate(
            flops=flops, transcendentals=0, bytes_accessed=bytes_accessed
        ),
    )(*operands)

    return out_full[:B, :out_dim]


# -----------------------------------------------------------------------------
# Pure-JAX reference (f32, highest matmul precision)
# -----------------------------------------------------------------------------
def seq2func_reference(cell_src, smiles_src, params):
    wc, bc, ws, bs, w1c, w1s, b1, w2, b2 = params
    dot = functools.partial(jnp.dot, precision=jax.lax.Precision.HIGHEST)
    cell_enc = dot(jnp.mean(cell_src, axis=1), wc) + bc
    smiles_enc = dot(jnp.mean(smiles_src, axis=1), ws) + bs
    ls = jnp.concatenate([cell_enc, smiles_enc], axis=1)
    w1 = jnp.concatenate([w1c, w1s], axis=0)
    h = _leaky_relu(dot(ls, w1) + b1)
    return _leaky_relu(dot(h, w2) + b2)


def init_params(key, Fc, Fs, Dc, Ds, H, O):
    ks = jax.random.split(key, 9)
    scale = 0.1
    wc = scale * jax.random.normal(ks[0], (Fc, Dc), jnp.float32)
    bc = scale * jax.random.normal(ks[1], (1, Dc), jnp.float32)
    ws = scale * jax.random.normal(ks[2], (Fs, Ds), jnp.float32)
    bs = scale * jax.random.normal(ks[3], (1, Ds), jnp.float32)
    w1c = scale * jax.random.normal(ks[4], (Dc, H), jnp.float32)
    w1s = scale * jax.random.normal(ks[5], (Ds, H), jnp.float32)
    b1 = scale * jax.random.normal(ks[6], (1, H), jnp.float32)
    w2 = scale * jax.random.normal(ks[7], (H, O), jnp.float32)
    b2 = scale * jax.random.normal(ks[8], (1, O), jnp.float32)
    return (wc, bc, ws, bs, w1c, w1s, b1, w2, b2)


if __name__ == "__main__":
    # Small shapes consistent with the module's forward:
    #   cell_src:   (B, Sc, Fc)  "cell line" sequence
    #   smiles_src: (B, Ss, Fs)  SMILES sequence
    B, Sc, Fc = 32, 16, 32
    Ss, Fs = 12, 24
    Dc, Ds = 32, 32      # cell_encoder.out_dim, smiles_encoder.out_dim
    H, O = 64, 8         # hid_dim, out_dim

    key = jax.random.PRNGKey(0)
    k_cell, k_smiles, k_params = jax.random.split(key, 3)
    cell_src = jax.random.normal(k_cell, (B, Sc, Fc), jnp.float32)
    smiles_src = jax.random.normal(k_smiles, (B, Ss, Fs), jnp.float32)
    params = init_params(k_params, Fc, Fs, Dc, Ds, H, O)
    fused = prepare_fused_params(params, Sc, Fc, Ss, Fs, Dc, Ds, H, O)

    # Default tm=256 is clamped to keep a 2-step grid at this tiny batch.
    out = seq2func_forward(cell_src, smiles_src, fused, O)
    out = jax.block_until_ready(out)

    ref = seq2func_reference(cell_src, smiles_src, params)
    assert out.shape == (B, O)
    # bf16 matmul operands with f32 accumulate -> looser tolerance than the
    # pure-f32 reference (values are O(0.1); observed error is ~1e-3).
    assert jnp.allclose(out, ref, rtol=3e-2, atol=3e-3), (
        f"mismatch vs reference: max|d|={float(jnp.max(jnp.abs(out - ref)))}"
    )

    print("KERNEL_OK")
</pallas_src>

<mosaic_0001>
module attributes {stable_mosaic.version = 11 : i64} {
  func.func @seq2func_kernel(%arg0: i32, %arg1: memref<16x512xbf16, #tpu.memory_space<vmem>>, %arg2: memref<16x384xbf16, #tpu.memory_space<vmem>>, %arg3: memref<512x128xbf16, #tpu.memory_space<vmem>>, %arg4: memref<384x128xbf16, #tpu.memory_space<vmem>>, %arg5: memref<1x128xf32, #tpu.memory_space<vmem>>, %arg6: memref<128x128xbf16, #tpu.memory_space<vmem>>, %arg7: memref<1x128xf32, #tpu.memory_space<vmem>>, %arg8: memref<16x128xf32, #tpu.memory_space<vmem>>) attributes {dimension_semantics = [#tpu.dimension_semantics<parallel>], iteration_bounds = array<i64: 2>, scalar_prefetch = 0 : i64, scratch_operands = 0 : i64, tpu.core_type = #tpu.core_type<tc>, window_params = [{transform_indices = @transform_0, window_bounds = array<i64: 16, 512>}, {transform_indices = @transform_1, window_bounds = array<i64: 16, 384>}, {pipeline_mode = #tpu.pipeline_mode<synchronous>, transform_indices = @transform_2, window_bounds = array<i64: 512, 128>}, {pipeline_mode = #tpu.pipeline_mode<synchronous>, transform_indices = @transform_3, window_bounds = array<i64: 384, 128>}, {pipeline_mode = #tpu.pipeline_mode<synchronous>, transform_indices = @transform_4, window_bounds = array<i64: 1, 128>}, {pipeline_mode = #tpu.pipeline_mode<synchronous>, transform_indices = @transform_5, window_bounds = array<i64: 128, 128>}, {pipeline_mode = #tpu.pipeline_mode<synchronous>, transform_indices = @transform_6, window_bounds = array<i64: 1, 128>}, {transform_indices = @transform_7, window_bounds = array<i64: 16, 128>}]} {
    %c0 = arith.constant 0 : index
    %c0_0 = arith.constant 0 : index
    %0 = vector.load %arg1[%c0, %c0_0] : memref<16x512xbf16, #tpu.memory_space<vmem>>, vector<16x512xbf16>
    %c0_1 = arith.constant 0 : index
    %c0_2 = arith.constant 0 : index
    %1 = vector.load %arg3[%c0_1, %c0_2] : memref<512x128xbf16, #tpu.memory_space<vmem>>, vector<512x128xbf16>
    %cst = arith.constant dense<0.000000e+00> : vector<16x128xf32>
    %2 = tpu.matmul %0, %1, %cst {dimension_numbers = #tpu.dot_dimension_numbers<[1], [0], [0], [1], [0, 0, 1, 1], [], []>} : vector<16x512xbf16>, vector<512x128xbf16>, vector<16x128xf32> -> vector<16x128xf32>
    %c0_3 = arith.constant 0 : index
    %c0_4 = arith.constant 0 : index
    %3 = vector.load %arg2[%c0_3, %c0_4] : memref<16x384xbf16, #tpu.memory_space<vmem>>, vector<16x384xbf16>
    %c0_5 = arith.constant 0 : index
    %c0_6 = arith.constant 0 : index
    %4 = vector.load %arg4[%c0_5, %c0_6] : memref<384x128xbf16, #tpu.memory_space<vmem>>, vector<384x128xbf16>
    %cst_7 = arith.constant dense<0.000000e+00> : vector<16x128xf32>
    %5 = tpu.matmul %3, %4, %cst_7 {dimension_numbers = #tpu.dot_dimension_numbers<[1], [0], [0], [1], [0, 0, 1, 1], [], []>} : vector<16x384xbf16>, vector<384x128xbf16>, vector<16x128xf32> -> vector<16x128xf32>
    %6 = arith.addf %2, %5 : vector<16x128xf32>
    %c0_8 = arith.constant 0 : index
    %c0_9 = arith.constant 0 : index
    %7 = vector.load %arg5[%c0_8, %c0_9] : memref<1x128xf32, #tpu.memory_space<vmem>>, vector<1x128xf32>
    %8 = vector.broadcast %7 : vector<1x128xf32> to vector<16x128xf32>
    %9 = arith.addf %6, %8 : vector<16x128xf32>
    %cst_10 = arith.constant 0.000000e+00 : f32
    %10 = vector.broadcast %cst_10 : f32 to vector<16x128xf32>
    %11 = arith.cmpf ogt, %9, %10 : vector<16x128xf32>
    %cst_11 = arith.constant 0.00999999977 : f32
    %12 = vector.broadcast %cst_11 : f32 to vector<16x128xf32>
    %13 = arith.mulf %12, %9 : vector<16x128xf32>
    %14 = arith.select %11, %9, %13 : vector<16x128xi1>, vector<16x128xf32>
    %15 = arith.truncf %14 : vector<16x128xf32> to vector<16x128xbf16>
    %c0_12 = arith.constant 0 : index
    %c0_13 = arith.constant 0 : index
    %16 = vector.load %arg6[%c0_12, %c0_13] : memref<128x128xbf16, #tpu.memory_space<vmem>>, vector<128x128xbf16>
    %cst_14 = arith.constant dense<0.000000e+00> : vector<16x128xf32>
    %17 = tpu.matmul %15, %16, %cst_14 {dimension_numbers = #tpu.dot_dimension_numbers<[1], [0], [0], [1], [0, 0, 1, 1], [], []>} : vector<16x128xbf16>, vector<128x128xbf16>, vector<16x128xf32> -> vector<16x128xf32>
    %c0_15 = arith.constant 0 : index
    %c0_16 = arith.constant 0 : index
    %18 = vector.load %arg7[%c0_15, %c0_16] : memref<1x128xf32, #tpu.memory_space<vmem>>, vector<1x128xf32>
    %19 = vector.broadcast %18 : vector<1x128xf32> to vector<16x128xf32>
    %20 = arith.addf %17, %19 : vector<16x128xf32>
    %cst_17 = arith.constant 0.000000e+00 : f32
    %21 = vector.broadcast %cst_17 : f32 to vector<16x128xf32>
    %22 = arith.cmpf ogt, %20, %21 : vector<16x128xf32>
    %cst_18 = arith.constant 0.00999999977 : f32
    %23 = vector.broadcast %cst_18 : f32 to vector<16x128xf32>
    %24 = arith.mulf %23, %20 : vector<16x128xf32>
    %25 = arith.select %22, %20, %24 : vector<16x128xi1>, vector<16x128xf32>
    %c0_19 = arith.constant 0 : index
    %c0_20 = arith.constant 0 : index
    %26 = vector.load %arg8[%c0_19, %c0_20] : memref<16x128xf32, #tpu.memory_space<vmem>>, vector<16x128xf32>
    tpu.vector_store %arg8[%c0_19, %c0_20], %25 {strides = array<i32>} : memref<16x128xf32, #tpu.memory_space<vmem>>, vector<16x128xf32>,
    return
  }
  func.func @transform_0(%arg0: i32) -> (i32, i32) {
    %c0_i32 = arith.constant 0 : i32
    %c0_i32_0 = arith.constant 0 : i32
    return %arg0, %c0_i32 : i32, i32
  }
  func.func @transform_1(%arg0: i32) -> (i32, i32) {
    %c0_i32 = arith.constant 0 : i32
    %c0_i32_0 = arith.constant 0 : i32
    return %arg0, %c0_i32 : i32, i32
  }
  func.func @transform_2(%arg0: i32) -> (i32, i32) {
    %c0_i32 = arith.constant 0 : i32
    %c0_i32_0 = arith.constant 0 : i32
    %c0_i32_1 = arith.constant 0 : i32
    return %c0_i32, %c0_i32_0 : i32, i32
  }
  func.func @transform_3(%arg0: i32) -> (i32, i32) {
    %c0_i32 = arith.constant 0 : i32
    %c0_i32_0 = arith.constant 0 : i32
    %c0_i32_1 = arith.constant 0 : i32
    return %c0_i32, %c0_i32_0 : i32, i32
  }
  func.func @transform_4(%arg0: i32) -> (i32, i32) {
    %c0_i32 = arith.constant 0 : i32
    %c0_i32_0 = arith.constant 0 : i32
    %c0_i32_1 = arith.constant 0 : i32
    return %c0_i32, %c0_i32_0 : i32, i32
  }
  func.func @transform_5(%arg0: i32) -> (i32, i32) {
    %c0_i32 = arith.constant 0 : i32
    %c0_i32_0 = arith.constant 0 : i32
    %c0_i32_1 = arith.constant 0 : i32
    return %c0_i32, %c0_i32_0 : i32, i32
  }
  func.func @transform_6(%arg0: i32) -> (i32, i32) {
    %c0_i32 = arith.constant 0 : i32
    %c0_i32_0 = arith.constant 0 : i32
    %c0_i32_1 = arith.constant 0 : i32
    return %c0_i32, %c0_i32_0 : i32, i32
  }
  func.func @transform_7(%arg0: i32) -> (i32, i32) {
    %c0_i32 = arith.constant 0 : i32
    %c0_i32_0 = arith.constant 0 : i32
    return %arg0, %c0_i32 : i32, i32
  }
}

</mosaic_0001>

<llo_original>
// kernel: tpu_custom_call.1
$region0: #{tpu_custom_call.1}
  #allocation0 [shape = 'u32[]', space=smem, size = 0x4, offset = 0x4, fixed_abs, tag = 'smem constant byte address 0x4 - core index']
  #allocation1 [shape = 'u32[144,128]{1,0:T(1,128)}', space=vmem, size = 0x12000, scoped, tag = 'internal scratch']
  %s0 = inlined_call_operand.hbm [shape: bf16[32,512], index: 0, kind: input, shape index: {}]
  %s1 = inlined_call_operand.hbm [shape: bf16[32,384], index: 1, kind: input, shape index: {}]
  %s2 = inlined_call_operand.hbm [shape: bf16[512,128], index: 2, kind: input, shape index: {}]
  %s3 = inlined_call_operand.hbm [shape: bf16[384,128], index: 3, kind: input, shape index: {}]
  %s4 = inlined_call_operand.vmem [shape: f32[1,128], index: 4, kind: input, shape index: {}]
  %s5 = inlined_call_operand.hbm [shape: bf16[128,128], index: 5, kind: input, shape index: {}]
  %s6 = inlined_call_operand.vmem [shape: f32[1,128], index: 6, kind: input, shape index: {}]
  %s7 = inlined_call_operand.hbm [shape: f32[32,128], index: 7, kind: output, shape index: {}]
  %s8 = sld [smem:[#allocation0]]
  $region81: #{tpu_custom_call.1} parent=0
    _
  %s10 = ssub.s32 1, %s8
  %s11 = scalar_select 0, %s10, %s8
  $region1: #{tpu_custom_call.1} parent=0
    #allocation2 [shape = 'u8[32768]{0}', space=vmem, size = 0x8000, scoped, tag = 'input window, operand 0']
    #allocation3 [shape = 's32[2]{0}', space=sflag, size = 0x8, scoped, tag = 'scoped memory for tpu_custom_call.1']
    #allocation4 [shape = 's32[2]{0}', space=sflag, size = 0x8, scoped, tag = 'scoped memory for tpu_custom_call.1']
    #allocation5 [shape = 'u8[24576]{0}', space=vmem, size = 0x6000, scoped, tag = 'input window, operand 1']
    #allocation6 [shape = 's32[2]{0}', space=sflag, size = 0x8, scoped, tag = 'scoped memory for tpu_custom_call.1']
    #allocation7 [shape = 'u8[131072]{0}', space=vmem, size = 0x20000, scoped, tag = 'input window, operand 2, single buffered']
    #allocation8 [shape = 'u8[98304]{0}', space=vmem, size = 0x18000, scoped, tag = 'input window, operand 3, single buffered']
    #allocation9 [shape = 's32[1]{0}', space=sflag, size = 0x4, scoped, tag = 'scoped memory for tpu_custom_call.1']
    #allocation10 [shape = 'u8[32768]{0}', space=vmem, size = 0x8000, scoped, tag = 'input window, operand 5, single buffered']
    #allocation11 [shape = 'u8[16384]{0}', space=vmem, size = 0x4000, scoped, tag = 'output window, operand 0']
    %12 = vsyncpa [#allocation3], 0
    %s13 = scalar_lea.sflag [#allocation3], 1
    %14 = vsyncpa %s13, 0
    %15 = vsyncpa [#allocation6], 0
    %s16 = scalar_lea.sflag [#allocation6], 1
    %17 = vsyncpa %s16, 0
    %18 = vsyncpa [#allocation9], 0
    %19 = vsyncpa [#allocation4], 0
    %s20 = scalar_lea.sflag [#allocation4], 1
    %21 = vsyncpa %s20, 0
    loop: start=0, step=1, limit=4
    $region2: #{tpu_custom_call.1} parent=1 // loop_pre_header
      _
    $region3: #{tpu_custom_call.1} parent=1 // loop_header
      %s23 = sphi 0, %s27
      %p24 = scmp.ge.s32.totalorder %s23, 4
      %s33 = sphi 0, %s35
      %s36 = sphi 0, %s33
      %s37 = sphi 0, %s36
      %s53 = sphi 0, %s37
      %s59 = sphi 0, %s61
      %s62 = sphi 0, %s59
      %s63 = sphi 0, %s62
      %s79 = sphi 0, %s63
      %s83 = sphi 0, %s83
      %s85 = sphi 0, %s83
      %s86 = sphi 0, %s85
      %s100 = sphi 0, %s86
      %s104 = sphi 0, %s104
      %s106 = sphi 0, %s104
      %s107 = sphi 0, %s106
      %s121 = sphi 0, %s107
      %s125 = sphi 0, %s125
      %s127 = sphi 0, %s125
      %s128 = sphi 0, %s127
      %s142 = sphi 0, %s128
      %s146 = sphi 0, %s146
      %s148 = sphi 0, %s146
      %s149 = sphi 0, %s148
      %s163 = sphi 0, %s149
      %s167 = sphi 0, %s167
      %s169 = sphi 0, %s167
      %s170 = sphi 0, %s169
      %s184 = sphi 0, %s170
      %s190 = sphi 0, %s192
      %s193 = sphi 0, %s190
      %s194 = sphi 0, %s193
      %s210 = sphi 0, %s194
    $region4: #{tpu_custom_call.1} parent=1 // loop_header_branch
      %26 = sbr.rel (%p24) target = $region8
    $region5: #{tpu_custom_call.1} parent=1 // loop_body
      %s28 = ssub.s32 %s23, 1
      %s29 = ssub.s32 %s23, 2
      %s30 = sadd.s32 %s23, 1
      %s31 = ssub.s32 %s23, %s30
      %p32 = scmp.eq.s32.totalorder %s31, 0
      %s34 = sadd.s32 %s33, 1
      %s35 = scalar_select %p32, %s33, %s34
      %p38 = pneg %p32
      %p39 = scmp.eq.s32.totalorder %s23, 1
      %p40 = por %p38, %p39
      %p41 = scmp.ne.s32.totalorder %s33, %s36
      %p42 = scmp.eq.s32.totalorder %s23, 0
      %p43 = por %p41, %p42
      %p44 = scmp.ne.s32.totalorder %s33, %s36
      %p45 = scmp.eq.s32.totalorder %s28, 1
      %p46 = por %p44, %p45
      %p47 = scmp.ne.s32.totalorder %s36, %s37
      %p48 = scmp.eq.s32.totalorder %s28, 0
      %p49 = por %p47, %p48
      %p50 = scmp.ne.s32.totalorder %s36, %s37
      %p51 = scmp.eq.s32.totalorder %s29, 1
      %p52 = por %p50, %p51
      %p54 = scmp.ne.s32.totalorder %s37, %s53
      %p55 = scmp.eq.s32.totalorder %s29, 0
      %p56 = por %p54, %p55
      %s57 = ssub.s32 %s23, %s30
      %p58 = scmp.eq.s32.totalorder %s57, 0
      %s60 = sadd.s32 %s59, 1
      %s61 = scalar_select %p58, %s59, %s60
      %p64 = pneg %p58
      %p65 = scmp.eq.s32.totalorder %s23, 1
      %p66 = por %p64, %p65
      %p67 = scmp.ne.s32.totalorder %s59, %s62
      %p68 = scmp.eq.s32.totalorder %s23, 0
      %p69 = por %p67, %p68
      %p70 = scmp.ne.s32.totalorder %s59, %s62
      %p71 = scmp.eq.s32.totalorder %s28, 1
      %p72 = por %p70, %p71
      %p73 = scmp.ne.s32.totalorder %s62, %s63
      %p74 = scmp.eq.s32.totalorder %s28, 0
      %p75 = por %p73, %p74
      %p76 = scmp.ne.s32.totalorder %s62, %s63
      %p77 = scmp.eq.s32.totalorder %s29, 1
      %p78 = por %p76, %p77
      %p80 = scmp.ne.s32.totalorder %s63, %s79
      %p81 = scmp.eq.s32.totalorder %s29, 0
      %p82 = por %p80, %p81
      %s84 = sadd.s32 %s83, 1
      %p87 = scmp.eq.s32.totalorder %s23, 1
      %p88 = scmp.ne.s32.totalorder %s83, %s85
      %p89 = scmp.eq.s32.totalorder %s23, 0
      %p90 = por %p88, %p89
      %p91 = scmp.ne.s32.totalorder %s83, %s85
      %p92 = scmp.eq.s32.totalorder %s28, 1
      %p93 = por %p91, %p92
      %p94 = scmp.ne.s32.totalorder %s85, %s86
      %p95 = scmp.eq.s32.totalorder %s28, 0
      %p96 = por %p94, %p95
      %p97 = scmp.ne.s32.totalorder %s85, %s86
      %p98 = scmp.eq.s32.totalorder %s29, 1
      %p99 = por %p97, %p98
      %p101 = scmp.ne.s32.totalorder %s86, %s100
      %p102 = scmp.eq.s32.totalorder %s29, 0
      %p103 = por %p101, %p102
      %s105 = sadd.s32 %s104, 1
      %p108 = scmp.eq.s32.totalorder %s23, 1
      %p109 = scmp.ne.s32.totalorder %s104, %s106
      %p110 = scmp.eq.s32.totalorder %s23, 0
      %p111 = por %p109, %p110
      %p112 = scmp.ne.s32.totalorder %s104, %s106
      %p113 = scmp.eq.s32.totalorder %s28, 1
      %p114 = por %p112, %p113
      %p115 = scmp.ne.s32.totalorder %s106, %s107
      %p116 = scmp.eq.s32.totalorder %s28, 0
      %p117 = por %p115, %p116
      %p118 = scmp.ne.s32.totalorder %s106, %s107
      %p119 = scmp.eq.s32.totalorder %s29, 1
      %p120 = por %p118, %p119
      %p122 = scmp.ne.s32.totalorder %s107, %s121
      %p123 = scmp.eq.s32.totalorder %s29, 0
      %p124 = por %p122, %p123
      %s126 = sadd.s32 %s125, 1
      %p129 = scmp.eq.s32.totalorder %s23, 1
      %p130 = scmp.ne.s32.totalorder %s125, %s127
      %p131 = scmp.eq.s32.totalorder %s23, 0
      %p132 = por %p130, %p131
      %p133 = scmp.ne.s32.totalorder %s125, %s127
      %p134 = scmp.eq.s32.totalorder %s28, 1
      %p135 = por %p133, %p134
      %p136 = scmp.ne.s32.totalorder %s127, %s128
      %p137 = scmp.eq.s32.totalorder %s28, 0
      %p138 = por %p136, %p137
      %p139 = scmp.ne.s32.totalorder %s127, %s128
      %p140 = scmp.eq.s32.totalorder %s29, 1
      %p141 = por %p139, %p140
      %p143 = scmp.ne.s32.totalorder %s128, %s142
      %p144 = scmp.eq.s32.totalorder %s29, 0
      %p145 = por %p143, %p144
      %s147 = sadd.s32 %s146, 1
      %p150 = scmp.eq.s32.totalorder %s23, 1
      %p151 = scmp.ne.s32.totalorder %s146, %s148
      %p152 = scmp.eq.s32.totalorder %s23, 0
      %p153 = por %p151, %p152
      %p154 = scmp.ne.s32.totalorder %s146, %s148
      %p155 = scmp.eq.s32.totalorder %s28, 1
      %p156 = por %p154, %p155
      %p157 = scmp.ne.s32.totalorder %s148, %s149
      %p158 = scmp.eq.s32.totalorder %s28, 0
      %p159 = por %p157, %p158
      %p160 = scmp.ne.s32.totalorder %s148, %s149
      %p161 = scmp.eq.s32.totalorder %s29, 1
      %p162 = por %p160, %p161
      %p164 = scmp.ne.s32.totalorder %s149, %s163
      %p165 = scmp.eq.s32.totalorder %s29, 0
      %p166 = por %p164, %p165
      %s168 = sadd.s32 %s167, 1
      %p171 = scmp.eq.s32.totalorder %s23, 1
      %p172 = scmp.ne.s32.totalorder %s167, %s169
      %p173 = scmp.eq.s32.totalorder %s23, 0
      %p174 = por %p172, %p173
      %p175 = scmp.ne.s32.totalorder %s167, %s169
      %p176 = scmp.eq.s32.totalorder %s28, 1
      %p177 = por %p175, %p176
      %p178 = scmp.ne.s32.totalorder %s169, %s170
      %p179 = scmp.eq.s32.totalorder %s28, 0
      %p180 = por %p178, %p179
      %p181 = scmp.ne.s32.totalorder %s169, %s170
      %p182 = scmp.eq.s32.totalorder %s29, 1
      %p183 = por %p181, %p182
      %p185 = scmp.ne.s32.totalorder %s170, %s184
      %p186 = scmp.eq.s32.totalorder %s29, 0
      %p187 = por %p185, %p186
      %s188 = ssub.s32 %s23, %s30
      %p189 = scmp.eq.s32.totalorder %s188, 0
      %s191 = sadd.s32 %s190, 1
      %s192 = scalar_select %p189, %s190, %s191
      %p195 = pneg %p189
      %p196 = scmp.eq.s32.totalorder %s23, 1
      %p197 = por %p195, %p196
      %p198 = scmp.ne.s32.totalorder %s190, %s193
      %p199 = scmp.eq.s32.totalorder %s23, 0
      %p200 = por %p198, %p199
      %p201 = scmp.ne.s32.totalorder %s190, %s193
      %p202 = scmp.eq.s32.totalorder %s28, 1
      %p203 = por %p201, %p202
      %p204 = scmp.ne.s32.totalorder %s193, %s194
      %p205 = scmp.eq.s32.totalorder %s28, 0
      %p206 = por %p204, %p205
      %p207 = scmp.ne.s32.totalorder %s193, %s194
      %p208 = scmp.eq.s32.totalorder %s29, 1
      %p209 = por %p207, %p208
      %p211 = scmp.ne.s32.totalorder %s194, %s210
      %p212 = scmp.eq.s32.totalorder %s29, 0
      %p213 = por %p211, %p212
      %p214 = scmp.le.s32.totalorder 1, %s23
      %p215 = scmp.lt.s32.totalorder %s23, 3
      %p216 = pnand %p214, %p215
      %p217 = pneg %p216
      // Predicated region
      $region9: #{tpu_custom_call.1} parent=5 // pred_check
        _
      $region10: #{tpu_custom_call.1} parent=5 // pred_check_branch
        %219 = sbr.rel (%p216) target = $region12
      $region11: #{tpu_custom_call.1} parent=5 // pred_region
        %s220 = ssub.s32 %s23, 1
        // Predicated region
        $region13: #{tpu_custom_call.1} parent=11 // pred_check
          %p221 = pneg %p96
        $region14: #{tpu_custom_call.1} parent=11 // pred_check_branch
          %223 = sbr.rel (%p221) target = $region16
        $region15: #{tpu_custom_call.1} parent=11 // pred_region
          %s225 = ssub.s32 4096, 4096
          %226 = vsyncadd [#allocation6], %s225
          %s227 = sshll.u32 [#allocation7], 4
          %s228 = int_to_ptr.vmem [resolvable:$true] %s227
          %233 = dma.hbm_to_vmem [thread:$0]  %s2, 4096, %s228, [#allocation6], 64, 64, 4
        $region16: #{tpu_custom_call.1} parent=11 // pred_fallthru
          _
        // Predicated region
        $region17: #{tpu_custom_call.1} parent=11 // pred_check
          %p234 = pneg %p117
        $region18: #{tpu_custom_call.1} parent=11 // pred_check_branch
          %236 = sbr.rel (%p234) target = $region20
        $region19: #{tpu_custom_call.1} parent=11 // pred_region
          %s238 = ssub.s32 3072, 3072
          %239 = vsyncadd [#allocation9], %s238
          %s240 = sshll.u32 [#allocation8], 4
          %s241 = int_to_ptr.vmem [resolvable:$true] %s240
          %246 = dma.hbm_to_vmem [thread:$0]  %s3, 3072, %s241, [#allocation9], 64, 64, 4
        $region20: #{tpu_custom_call.1} parent=11 // pred_fallthru
          _
        // Predicated region
        $region21: #{tpu_custom_call.1} parent=11 // pred_check
          %p247 = pneg %p138
        $region22: #{tpu_custom_call.1} parent=11 // pred_check_branch
          %249 = sbr.rel (%p247) target = $region24
        $region23: #{tpu_custom_call.1} parent=11 // pred_region
          _
        $region24: #{tpu_custom_call.1} parent=11 // pred_fallthru
          _
        // Predicated region
        $region25: #{tpu_custom_call.1} parent=11 // pred_check
          %p250 = pneg %p159
        $region26: #{tpu_custom_call.1} parent=11 // pred_check_branch
          %252 = sbr.rel (%p250) target = $region28
        $region27: #{tpu_custom_call.1} parent=11 // pred_region
          %s254 = ssub.s32 1024, 1024
          %255 = vsyncadd [#allocation9], %s254
          %s256 = sshll.u32 [#allocation10], 4
          %s257 = int_to_ptr.vmem [resolvable:$true] %s256
          %262 = dma.hbm_to_vmem [thread:$0]  %s5, 1024, %s257, [#allocation9], 64, 64, 4
        $region28: #{tpu_custom_call.1} parent=11 // pred_fallthru
          _
        // Predicated region
        $region29: #{tpu_custom_call.1} parent=11 // pred_check
          %p263 = pneg %p180
        $region30: #{tpu_custom_call.1} parent=11 // pred_check_branch
          %265 = sbr.rel (%p263) target = $region32
        $region31: #{tpu_custom_call.1} parent=11 // pred_region
          _
        $region32: #{tpu_custom_call.1} parent=11 // pred_fallthru
          _
      $region12: #{tpu_custom_call.1} parent=5 // pred_fallthru
        _
      %p266 = scmp.lt.s32.totalorder %s23, 2
      // Predicated region
      $region33: #{tpu_custom_call.1} parent=5 // pred_check
        %p267 = pneg %p266
      $region34: #{tpu_custom_call.1} parent=5 // pred_check_branch
        %269 = sbr.rel (%p267) target = $region36
      $region35: #{tpu_custom_call.1} parent=5 // pred_region
        // Predicated region
        $region37: #{tpu_custom_call.1} parent=35 // pred_check
          %p270 = pneg %p43
        $region38: #{tpu_custom_call.1} parent=35 // pred_check_branch
          %272 = sbr.rel (%p270) target = $region40
        $region39: #{tpu_custom_call.1} parent=35 // pred_region
          %s273 = sand.u32 %s33, 1
          %s274 = scalar_lea.sflag [#allocation3], %s273
          %s275 = sand.u32 %s33, 1
          %s276 = smul.addr %s275, 32
          %s277 = scalar_lea.vmem [#allocation2], %s276
          %s278 = smul.u32 2, %s23
          %s280 = ssub.s32 512, 512
          %281 = vsyncadd %s274, %s280
          %s282 = smul.addr %s278, 4
          %s283 = smul.addr %s282, 64
          %s284 = scalar_lea.hbm %s0, %s283
          %s285 = sshll.u32 %s277, 4
          %s286 = int_to_ptr.vmem [resolvable:$true] %s285
          %291 = dma.hbm_to_vmem [thread:$0]  %s284, 512, %s286, %s274, 256, 256, 16
        $region40: #{tpu_custom_call.1} parent=35 // pred_fallthru
          _
        // Predicated region
        $region41: #{tpu_custom_call.1} parent=35 // pred_check
          %p292 = pneg %p69
        $region42: #{tpu_custom_call.1} parent=35 // pred_check_branch
          %294 = sbr.rel (%p292) target = $region44
        $region43: #{tpu_custom_call.1} parent=35 // pred_region
          %s295 = sand.u32 %s23, 1
          %s296 = scalar_lea.sflag [#allocation6], %s295
          %s297 = sand.u32 %s59, 1
          %s298 = smul.addr %s297, 24
          %s299 = scalar_lea.vmem [#allocation5], %s298
          %s300 = smul.u32 2, %s23
          %s302 = ssub.s32 384, 384
          %303 = vsyncadd %s296, %s302
          %s304 = smul.addr %s300, 3
          %s305 = smul.addr %s304, 64
          %s306 = scalar_lea.hbm %s1, %s305
          %s307 = sshll.u32 %s299, 4
          %s308 = int_to_ptr.vmem [resolvable:$true] %s307
          %313 = dma.hbm_to_vmem [thread:$0]  %s306, 384, %s308, %s296, 192, 192, 12
        $region44: #{tpu_custom_call.1} parent=35 // pred_fallthru
          _
      $region36: #{tpu_custom_call.1} parent=5 // pred_fallthru
        _
      %p314 = scmp.le.s32.totalorder 1, %s23
      %p315 = scmp.lt.s32.totalorder %s23, 3
      %p316 = pnand %p314, %p315
      %p317 = pneg %p316
      // Predicated region
      $region45: #{tpu_custom_call.1} parent=5 // pred_check
        _
      $region46: #{tpu_custom_call.1} parent=5 // pred_check_branch
        %319 = sbr.rel (%p316) target = $region48
      $region47: #{tpu_custom_call.1} parent=5 // pred_region
        %s320 = ssub.s32 %s23, 1
        %s321 = sand.u32 %s36, 1
        %s322 = scalar_lea.sflag [#allocation3], %s321
        %s323 = sand.u32 %s36, 1
        %s324 = smul.addr %s323, 32
        %s325 = scalar_lea.vmem [#allocation2], %s324
        // Predicated region
        $region49: #{tpu_custom_call.1} parent=47 // pred_check
          %p326 = pneg %p49
        $region50: #{tpu_custom_call.1} parent=47 // pred_check_branch
          %328 = sbr.rel (%p326) target = $region52
        $region51: #{tpu_custom_call.1} parent=47 // pred_region
          %329 = dma.done %s322, 512
        $region52: #{tpu_custom_call.1} parent=47 // pred_fallthru
          _
        %s330 = sand.u32 %s28, 1
        %s331 = scalar_lea.sflag [#allocation6], %s330
        %s332 = sand.u32 %s62, 1
        %s333 = smul.addr %s332, 24
        %s334 = scalar_lea.vmem [#allocation5], %s333
        // Predicated region
        $region53: #{tpu_custom_call.1} parent=47 // pred_check
          %p335 = pneg %p75
        $region54: #{tpu_custom_call.1} parent=47 // pred_check_branch
          %337 = sbr.rel (%p335) target = $region56
        $region55: #{tpu_custom_call.1} parent=47 // pred_region
          %338 = dma.done %s331, 384
        $region56: #{tpu_custom_call.1} parent=47 // pred_fallthru
          _
        // Predicated region
        $region57: #{tpu_custom_call.1} parent=47 // pred_check
          %p339 = pneg %p96
        $region58: #{tpu_custom_call.1} parent=47 // pred_check_branch
          %341 = sbr.rel (%p339) target = $region60
        $region59: #{tpu_custom_call.1} parent=47 // pred_region
          %342 = dma.done [#allocation6], 4096
        $region60: #{tpu_custom_call.1} parent=47 // pred_fallthru
          _
        // Predicated region
        $region61: #{tpu_custom_call.1} parent=47 // pred_check
          %p343 = pneg %p117
        $region62: #{tpu_custom_call.1} parent=47 // pred_check_branch
          %345 = sbr.rel (%p343) target = $region64
        $region63: #{tpu_custom_call.1} parent=47 // pred_region
          %346 = dma.done [#allocation9], 3072
        $region64: #{tpu_custom_call.1} parent=47 // pred_fallthru
          _
        // Predicated region
        $region65: #{tpu_custom_call.1} parent=47 // pred_check
          %p347 = pneg %p159
        $region66: #{tpu_custom_call.1} parent=47 // pred_check_branch
          %349 = sbr.rel (%p347) target = $region68
        $region67: #{tpu_custom_call.1} parent=47 // pred_region
          %350 = dma.done [#allocation9], 1024
        $region68: #{tpu_custom_call.1} parent=47 // pred_fallthru
          _
        %s351 = sand.u32 %s36, 1
        %s352 = scalar_lea.sflag [#allocation3], %s351
        %s353 = sand.u32 %s36, 1
        %s354 = smul.addr %s353, 32
        %s355 = scalar_lea.vmem [#allocation2], %s354
        %p356 = pneg %p49
        %p357 = pneg %p46
        %s358 = sand.u32 %s28, 1
        %s359 = scalar_lea.sflag [#allocation6], %s358
        %s360 = sand.u32 %s62, 1
        %s361 = smul.addr %s360, 24
        %s362 = scalar_lea.vmem [#allocation5], %s361
        %p363 = pneg %p75
        %p364 = pneg %p72
        %p365 = pneg %p96
        %p366 = pneg %p93
        %p367 = pneg %p117
        %p368 = pneg %p114
        %p369 = pneg %p138
        %p370 = pneg %p135
        %p371 = pneg %p159
        %p372 = pneg %p156
        %p373 = pneg %p180
        %p374 = pneg %p177
        %p375 = pneg %p206
        %p376 = pneg %p203
        %s377 = sand.u32 %s193, 1
        %s378 = scalar_lea.sflag [#allocation4], %s377
        %s379 = sand.u32 %s193, 1
        %s380 = smul.addr %s379, 16
        %s381 = scalar_lea.vmem [#allocation11], %s380
        %s382 = smul.u32 2, %s28
        %s383 = smul.u32 2, %s28
        %s384 = smul.u32 2, %s28
        %v386 = vld [vmem:[%s325] sm:$0xff]
        %v387 = vld [vmem:[%s325 + $0x8] sm:$0xff]
        %v388 = vld [vmem:[%s325 + $0x10] sm:$0xff]
        %v389 = vld [vmem:[%s325 + $0x18] sm:$0xff]
        %v390 = vld [vmem:[#allocation7] sm:$0xf]
        %v391 = vld [vmem:[#allocation7 + $0x4] sm:$0xf]
        %v392 = vld [vmem:[#allocation7 + $0x8] sm:$0xf]
        %v393 = vld [vmem:[#allocation7 + $0xc] sm:$0xf]
        %v394 = vld [vmem:[#allocation7 + $0x10] sm:$0xf]
        %v395 = vld [vmem:[#allocation7 + $0x14] sm:$0xf]
        %v396 = vld [vmem:[#allocation7 + $0x18] sm:$0xf]
        %v397 = vld [vmem:[#allocation7 + $0x1c] sm:$0xf]
        %v398 = vld [vmem:[#allocation7 + $0x20] sm:$0xf]
        %v399 = vld [vmem:[#allocation7 + $0x24] sm:$0xf]
        %v400 = vld [vmem:[#allocation7 + $0x28] sm:$0xf]
        %v401 = vld [vmem:[#allocation7 + $0x2c] sm:$0xf]
        %v402 = vld [vmem:[#allocation7 + $0x30] sm:$0xf]
        %v403 = vld [vmem:[#allocation7 + $0x34] sm:$0xf]
        %v404 = vld [vmem:[#allocation7 + $0x38] sm:$0xf]
        %v405 = vld [vmem:[#allocation7 + $0x3c] sm:$0xf]
        %v406 = vld [vmem:[#allocation7 + $0x40] sm:$0xf]
        %v407 = vld [vmem:[#allocation7 + $0x44] sm:$0xf]
        %v408 = vld [vmem:[#allocation7 + $0x48] sm:$0xf]
        %v409 = vld [vmem:[#allocation7 + $0x4c] sm:$0xf]
        %v410 = vld [vmem:[#allocation7 + $0x50] sm:$0xf]
        %v411 = vld [vmem:[#allocation7 + $0x54] sm:$0xf]
        %v412 = vld [vmem:[#allocation7 + $0x58] sm:$0xf]
        %v413 = vld [vmem:[#allocation7 + $0x5c] sm:$0xf]
        %v414 = vld [vmem:[#allocation7 + $0x60] sm:$0xf]
        %v415 = vld [vmem:[#allocation7 + $0x64] sm:$0xf]
        %v416 = vld [vmem:[#allocation7 + $0x68] sm:$0xf]
        %v417 = vld [vmem:[#allocation7 + $0x6c] sm:$0xf]
        %v418 = vld [vmem:[#allocation7 + $0x70] sm:$0xf]
        %v419 = vld [vmem:[#allocation7 + $0x74] sm:$0xf]
        %v420 = vld [vmem:[#allocation7 + $0x78] sm:$0xf]
        %v421 = vld [vmem:[#allocation7 + $0x7c] sm:$0xf]
        %v422 = vld [vmem:[#allocation7 + $0x80] sm:$0xf]
        %v423 = vld [vmem:[#allocation7 + $0x84] sm:$0xf]
        %v424 = vld [vmem:[#allocation7 + $0x88] sm:$0xf]
        %v425 = vld [vmem:[#allocation7 + $0x8c] sm:$0xf]
        %v426 = vld [vmem:[#allocation7 + $0x90] sm:$0xf]
        %v427 = vld [vmem:[#allocation7 + $0x94] sm:$0xf]
        %v428 = vld [vmem:[#allocation7 + $0x98] sm:$0xf]
        %v429 = vld [vmem:[#allocation7 + $0x9c] sm:$0xf]
        %v430 = vld [vmem:[#allocation7 + $0xa0] sm:$0xf]
        %v431 = vld [vmem:[#allocation7 + $0xa4] sm:$0xf]
        %v432 = vld [vmem:[#allocation7 + $0xa8] sm:$0xf]
        %v433 = vld [vmem:[#allocation7 + $0xac] sm:$0xf]
        %v434 = vld [vmem:[#allocation7 + $0xb0] sm:$0xf]
        %v435 = vld [vmem:[#allocation7 + $0xb4] sm:$0xf]
        %v436 = vld [vmem:[#allocation7 + $0xb8] sm:$0xf]
        %v437 = vld [vmem:[#allocation7 + $0xbc] sm:$0xf]
        %v438 = vld [vmem:[#allocation7 + $0xc0] sm:$0xf]
        %v439 = vld [vmem:[#allocation7 + $0xc4] sm:$0xf]
        %v440 = vld [vmem:[#allocation7 + $0xc8] sm:$0xf]
        %v441 = vld [vmem:[#allocation7 + $0xcc] sm:$0xf]
        %v442 = vld [vmem:[#allocation7 + $0xd0] sm:$0xf]
        %v443 = vld [vmem:[#allocation7 + $0xd4] sm:$0xf]
        %v444 = vld [vmem:[#allocation7 + $0xd8] sm:$0xf]
        %v445 = vld [vmem:[#allocation7 + $0xdc] sm:$0xf]
        %v446 = vld [vmem:[#allocation7 + $0xe0] sm:$0xf]
        %v447 = vld [vmem:[#allocation7 + $0xe4] sm:$0xf]
        %v448 = vld [vmem:[#allocation7 + $0xe8] sm:$0xf]
        %v449 = vld [vmem:[#allocation7 + $0xec] sm:$0xf]
        %v450 = vld [vmem:[#allocation7 + $0xf0] sm:$0xf]
        %v451 = vld [vmem:[#allocation7 + $0xf4] sm:$0xf]
        %v452 = vld [vmem:[#allocation7 + $0xf8] sm:$0xf]
        %v453 = vld [vmem:[#allocation7 + $0xfc] sm:$0xf]
        %v454 = vld [vmem:[%s334] sm:$0xff]
        %v455 = vld [vmem:[%s334 + $0x8] sm:$0xf]
        %v456 = vld [vmem:[%s334 + $0xc] sm:$0xff]
        %v457 = vld [vmem:[%s334 + $0x14] sm:$0xf]
        %v458 = vld [vmem:[#allocation8] sm:$0xf]
        %v459 = vld [vmem:[#allocation8 + $0x4] sm:$0xf]
        %v460 = vld [vmem:[#allocation8 + $0x8] sm:$0xf]
        %v461 = vld [vmem:[#allocation8 + $0xc] sm:$0xf]
        %v462 = vld [vmem:[#allocation8 + $0x10] sm:$0xf]
        %v463 = vld [vmem:[#allocation8 + $0x14] sm:$0xf]
        %v464 = vld [vmem:[#allocation8 + $0x18] sm:$0xf]
        %v465 = vld [vmem:[#allocation8 + $0x1c] sm:$0xf]
        %v466 = vld [vmem:[#allocation8 + $0x20] sm:$0xf]
        %v467 = vld [vmem:[#allocation8 + $0x24] sm:$0xf]
        %v468 = vld [vmem:[#allocation8 + $0x28] sm:$0xf]
        %v469 = vld [vmem:[#allocation8 + $0x2c] sm:$0xf]
        %v470 = vld [vmem:[#allocation8 + $0x30] sm:$0xf]
        %v471 = vld [vmem:[#allocation8 + $0x34] sm:$0xf]
        %v472 = vld [vmem:[#allocation8 + $0x38] sm:$0xf]
        %v473 = vld [vmem:[#allocation8 + $0x3c] sm:$0xf]
        %v474 = vld [vmem:[#allocation8 + $0x40] sm:$0xf]
        %v475 = vld [vmem:[#allocation8 + $0x44] sm:$0xf]
        %v476 = vld [vmem:[#allocation8 + $0x48] sm:$0xf]
        %v477 = vld [vmem:[#allocation8 + $0x4c] sm:$0xf]
        %v478 = vld [vmem:[#allocation8 + $0x50] sm:$0xf]
        %v479 = vld [vmem:[#allocation8 + $0x54] sm:$0xf]
        %v480 = vld [vmem:[#allocation8 + $0x58] sm:$0xf]
        %v481 = vld [vmem:[#allocation8 + $0x5c] sm:$0xf]
        %v482 = vld [vmem:[#allocation8 + $0x60] sm:$0xf]
        %v483 = vld [vmem:[#allocation8 + $0x64] sm:$0xf]
        %v484 = vld [vmem:[#allocation8 + $0x68] sm:$0xf]
        %v485 = vld [vmem:[#allocation8 + $0x6c] sm:$0xf]
        %v486 = vld [vmem:[#allocation8 + $0x70] sm:$0xf]
        %v487 = vld [vmem:[#allocation8 + $0x74] sm:$0xf]
        %v488 = vld [vmem:[#allocation8 + $0x78] sm:$0xf]
        %v489 = vld [vmem:[#allocation8 + $0x7c] sm:$0xf]
        %v490 = vld [vmem:[#allocation8 + $0x80] sm:$0xf]
        %v491 = vld [vmem:[#allocation8 + $0x84] sm:$0xf]
        %v492 = vld [vmem:[#allocation8 + $0x88] sm:$0xf]
        %v493 = vld [vmem:[#allocation8 + $0x8c] sm:$0xf]
        %v494 = vld [vmem:[#allocation8 + $0x90] sm:$0xf]
        %v495 = vld [vmem:[#allocation8 + $0x94] sm:$0xf]
        %v496 = vld [vmem:[#allocation8 + $0x98] sm:$0xf]
        %v497 = vld [vmem:[#allocation8 + $0x9c] sm:$0xf]
        %v498 = vld [vmem:[#allocation8 + $0xa0] sm:$0xf]
        %v499 = vld [vmem:[#allocation8 + $0xa4] sm:$0xf]
        %v500 = vld [vmem:[#allocation8 + $0xa8] sm:$0xf]
        %v501 = vld [vmem:[#allocation8 + $0xac] sm:$0xf]
        %v502 = vld [vmem:[#allocation8 + $0xb0] sm:$0xf]
        %v503 = vld [vmem:[#allocation8 + $0xb4] sm:$0xf]
        %v504 = vld [vmem:[#allocation8 + $0xb8] sm:$0xf]
        %v505 = vld [vmem:[#allocation8 + $0xbc] sm:$0xf]
        %v510 = vunpack.c.l.b16 %v454
        %v511 = vunpack.c.h.b16 %v454
        %v512 = vunpack.c.l.b16 %v455
        %v513 = vunpack.c.l.b16 %v456
        %v514 = vunpack.c.h.b16 %v456
        %v515 = vunpack.c.l.b16 %v457
        %v516 = vpack.c.b16 %v513, %v510
        %v517 = vpack.c.b16 %v514, %v511
        %v518 = vpack.c.b16 %v515, %v512
        %v570 = vunpack.c.l.b16 %v458
        %v571 = vunpack.c.l.b16 %v459
        %v572 = vunpack.c.l.b16 %v460
        %v573 = vunpack.c.l.b16 %v461
        %v574 = vunpack.c.l.b16 %v462
        %v575 = vunpack.c.l.b16 %v463
        %v576 = vunpack.c.l.b16 %v464
        %v577 = vunpack.c.l.b16 %v465
        %v578 = vunpack.c.l.b16 %v466
        %v579 = vunpack.c.l.b16 %v467
        %v580 = vunpack.c.l.b16 %v468
        %v581 = vunpack.c.l.b16 %v469
        %v582 = vunpack.c.l.b16 %v470
        %v583 = vunpack.c.l.b16 %v471
        %v584 = vunpack.c.l.b16 %v472
        %v585 = vunpack.c.l.b16 %v473
        %v586 = vunpack.c.l.b16 %v474
        %v587 = vunpack.c.l.b16 %v475
        %v588 = vunpack.c.l.b16 %v476
        %v589 = vunpack.c.l.b16 %v477
        %v590 = vunpack.c.l.b16 %v478
        %v591 = vunpack.c.l.b16 %v479
        %v592 = vunpack.c.l.b16 %v480
        %v593 = vunpack.c.l.b16 %v481
        %v594 = vunpack.c.l.b16 %v482
        %v595 = vunpack.c.l.b16 %v483
        %v596 = vunpack.c.l.b16 %v484
        %v597 = vunpack.c.l.b16 %v485
        %v598 = vunpack.c.l.b16 %v486
        %v599 = vunpack.c.l.b16 %v487
        %v600 = vunpack.c.l.b16 %v488
        %v601 = vunpack.c.l.b16 %v489
        %v602 = vunpack.c.l.b16 %v490
        %v603 = vunpack.c.l.b16 %v491
        %v604 = vunpack.c.l.b16 %v492
        %v605 = vunpack.c.l.b16 %v493
        %v606 = vunpack.c.l.b16 %v494
        %v607 = vunpack.c.l.b16 %v495
        %v608 = vunpack.c.l.b16 %v496
        %v609 = vunpack.c.l.b16 %v497
        %v610 = vunpack.c.l.b16 %v498
        %v611 = vunpack.c.l.b16 %v499
        %v612 = vunpack.c.l.b16 %v500
        %v613 = vunpack.c.l.b16 %v501
        %v614 = vunpack.c.l.b16 %v502
        %v615 = vunpack.c.l.b16 %v503
        %v616 = vunpack.c.l.b16 %v504
        %v617 = vunpack.c.l.b16 %v505
        %v618 = vpack.c.b16 %v571, %v570
        %v619 = vpack.c.b16 %v573, %v572
        %v620 = vpack.c.b16 %v575, %v574
        %v621 = vpack.c.b16 %v577, %v576
        %v622 = vpack.c.b16 %v579, %v578
        %v623 = vpack.c.b16 %v581, %v580
        %v624 = vpack.c.b16 %v583, %v582
        %v625 = vpack.c.b16 %v585, %v584
        %v626 = vpack.c.b16 %v587, %v586
        %v627 = vpack.c.b16 %v589, %v588
        %v628 = vpack.c.b16 %v591, %v590
        %v629 = vpack.c.b16 %v593, %v592
        %v630 = vpack.c.b16 %v595, %v594
        %v631 = vpack.c.b16 %v597, %v596
        %v632 = vpack.c.b16 %v599, %v598
        %v633 = vpack.c.b16 %v601, %v600
        %v634 = vpack.c.b16 %v603, %v602
        %v635 = vpack.c.b16 %v605, %v604
        %v636 = vpack.c.b16 %v607, %v606
        %v637 = vpack.c.b16 %v609, %v608
        %v638 = vpack.c.b16 %v611, %v610
        %v639 = vpack.c.b16 %v613, %v612
        %v640 = vpack.c.b16 %v615, %v614
        %v641 = vpack.c.b16 %v617, %v616
        %666 = vmatprep.subr.bf16.mxu0 0
        %667 = vmatpush1.bf16.msra.mxu0 %v618
        %668 = vmatprep.subr.bf16.mxu0 0
        %669 = vmatpush1.bf16.msra.mxu0 %v619
        %670 = vmatprep.subr.bf16.mxu0 0
        %671 = vmatpush1.bf16.msra.mxu0 %v620
        %672 = vmatprep.subr.bf16.mxu0 0
        %673 = vmatpush1.bf16.msra.mxu0 %v621
        %674 = vmatprep.subr.bf16.mxu0 0
        %675 = vmatpush1.bf16.msra.mxu0 %v622
        %676 = vmatprep.subr.bf16.mxu0 0
        %677 = vmatpush1.bf16.msra.mxu0 %v623
        %678 = vmatprep.subr.bf16.mxu0 0
        %679 = vmatpush1.bf16.msra.mxu0 %v624
        %680 = vmatprep.subr.bf16.mxu0 0
        %681 = vmatpush1.bf16.msra.mxu0 %v625
        %682 = vmatprep.subr.bf16.mxu0 0
        %683 = vmatpush1.bf16.msra.mxu0 %v626
        %684 = vmatprep.subr.bf16.mxu0 0
        %685 = vmatpush1.bf16.msra.mxu0 %v627
        %686 = vmatprep.subr.bf16.mxu0 0
        %687 = vmatpush1.bf16.msra.mxu0 %v628
        %688 = vmatprep.subr.bf16.mxu0 0
        %689 = vmatpush1.bf16.msra.mxu0 %v629
        %690 = vmatprep.subr.bf16.mxu0 0
        %691 = vmatpush1.bf16.msra.mxu0 %v630
        %692 = vmatprep.subr.bf16.mxu0 0
        %693 = vmatpush1.bf16.msra.mxu0 %v631
        %694 = vmatprep.subr.bf16.mxu0 0
        %695 = vmatpush1.bf16.msra.mxu0 %v632
        %696 = vmatprep.subr.bf16.mxu0 0
        %697 = vmatpush1.bf16.msra.mxu0 %v633
        %698 = vmatprep.mubr.bf16.mxu0 %v517
        %699 = vmatmul.mubr.bf16.gmra.mrb[0].mxu0 %v516
        %v700 = vpop.f32.mrb[0].mxu0
        %v701 = vadd.f32 0.0, %v700
        %v702 = vpop.f32.mrb[0].mxu0
        %v703 = vpop.f32.mrb[0].mxu0
        %v704 = vadd.f32 0.0, %v703
        %v705 = vpop.f32.mrb[0].mxu0
        %706 = vdwg.mxu0
        %707 = vmatprep.subr.bf16.mxu0 0
        %708 = vmatpush1.bf16.msra.mxu0 %v634
        %709 = vmatprep.subr.bf16.mxu0 0
        %710 = vmatpush1.bf16.msra.mxu0 %v635
        %711 = vmatprep.subr.bf16.mxu0 0
        %712 = vmatpush1.bf16.msra.mxu0 %v636
        %713 = vmatprep.subr.bf16.mxu0 0
        %714 = vmatpush1.bf16.msra.mxu0 %v637
        %715 = vmatprep.subr.bf16.mxu0 0
        %716 = vmatpush1.bf16.msra.mxu0 %v638
        %717 = vmatprep.subr.bf16.mxu0 0
        %718 = vmatpush1.bf16.msra.mxu0 %v639
        %719 = vmatprep.subr.bf16.mxu0 0
        %720 = vmatpush1.bf16.msra.mxu0 %v640
        %721 = vmatprep.subr.bf16.mxu0 0
        %722 = vmatpush1.bf16.msra.mxu0 %v641
        %723 = vmatprep.subr.bf16.mxu0 0
        %724 = vmatpush1.bf16.msra.mxu0 0
        %725 = vmatprep.subr.bf16.mxu0 0
        %726 = vmatpush1.bf16.msra.mxu0 0
        %727 = vmatprep.subr.bf16.mxu0 0
        %728 = vmatpush1.bf16.msra.mxu0 0
        %729 = vmatprep.subr.bf16.mxu0 0
        %730 = vmatpush1.bf16.msra.mxu0 0
        %731 = vmatprep.subr.bf16.mxu0 0
        %732 = vmatpush1.bf16.msra.mxu0 0
        %733 = vmatprep.subr.bf16.mxu0 0
        %734 = vmatpush1.bf16.msra.mxu0 0
        %735 = vmatprep.subr.bf16.mxu0 0
        %736 = vmatpush1.bf16.msra.mxu0 0
        %737 = vmatprep.subr.bf16.mxu0 0
        %738 = vmatpush1.bf16.msra.mxu0 0
        %739 = vmatprep.mubr.bf16.mxu0 0
        %740 = vmatmul.mubr.bf16.gmra.mrb[0].mxu0 %v518
        %v741 = vpop.f32.mrb[0].mxu0
        %v742 = vadd.f32 %v701, %v741
        %v743 = vpop.f32.mrb[0].mxu0
        %v744 = vpop.f32.mrb[0].mxu0
        %v745 = vadd.f32 %v704, %v744
        %v746 = vpop.f32.mrb[0].mxu0
        %747 = vdwg.mxu0
        %v752 = vunpack.c.l.b16 %v386
        %v753 = vunpack.c.h.b16 %v386
        %v754 = vunpack.c.l.b16 %v387
        %v755 = vunpack.c.h.b16 %v387
        %v756 = vunpack.c.l.b16 %v388
        %v757 = vunpack.c.h.b16 %v388
        %v758 = vunpack.c.l.b16 %v389
        %v759 = vunpack.c.h.b16 %v389
        %v760 = vpack.c.b16 %v756, %v752
        %v761 = vpack.c.b16 %v757, %v753
        %v762 = vpack.c.b16 %v758, %v754
        %v763 = vpack.c.b16 %v759, %v755
        %v832 = vunpack.c.l.b16 %v390
        %v833 = vunpack.c.l.b16 %v391
        %v834 = vunpack.c.l.b16 %v392
        %v835 = vunpack.c.l.b16 %v393
        %v836 = vunpack.c.l.b16 %v394
        %v837 = vunpack.c.l.b16 %v395
        %v838 = vunpack.c.l.b16 %v396
        %v839 = vunpack.c.l.b16 %v397
        %v840 = vunpack.c.l.b16 %v398
        %v841 = vunpack.c.l.b16 %v399
        %v842 = vunpack.c.l.b16 %v400
        %v843 = vunpack.c.l.b16 %v401
        %v844 = vunpack.c.l.b16 %v402
        %v845 = vunpack.c.l.b16 %v403
        %v846 = vunpack.c.l.b16 %v404
        %v847 = vunpack.c.l.b16 %v405
        %v848 = vunpack.c.l.b16 %v406
        %v849 = vunpack.c.l.b16 %v407
        %v850 = vunpack.c.l.b16 %v408
        %v851 = vunpack.c.l.b16 %v409
        %v852 = vunpack.c.l.b16 %v410
        %v853 = vunpack.c.l.b16 %v411
        %v854 = vunpack.c.l.b16 %v412
        %v855 = vunpack.c.l.b16 %v413
        %v856 = vunpack.c.l.b16 %v414
        %v857 = vunpack.c.l.b16 %v415
        %v858 = vunpack.c.l.b16 %v416
        %v859 = vunpack.c.l.b16 %v417
        %v860 = vunpack.c.l.b16 %v418
        %v861 = vunpack.c.l.b16 %v419
        %v862 = vunpack.c.l.b16 %v420
        %v863 = vunpack.c.l.b16 %v421
        %v864 = vunpack.c.l.b16 %v422
        %v865 = vunpack.c.l.b16 %v423
        %v866 = vunpack.c.l.b16 %v424
        %v867 = vunpack.c.l.b16 %v425
        %v868 = vunpack.c.l.b16 %v426
        %v869 = vunpack.c.l.b16 %v427
        %v870 = vunpack.c.l.b16 %v428
        %v871 = vunpack.c.l.b16 %v429
        %v872 = vunpack.c.l.b16 %v430
        %v873 = vunpack.c.l.b16 %v431
        %v874 = vunpack.c.l.b16 %v432
        %v875 = vunpack.c.l.b16 %v433
        %v876 = vunpack.c.l.b16 %v434
        %v877 = vunpack.c.l.b16 %v435
        %v878 = vunpack.c.l.b16 %v436
        %v879 = vunpack.c.l.b16 %v437
        %v880 = vunpack.c.l.b16 %v438
        %v881 = vunpack.c.l.b16 %v439
        %v882 = vunpack.c.l.b16 %v440
        %v883 = vunpack.c.l.b16 %v441
        %v884 = vunpack.c.l.b16 %v442
        %v885 = vunpack.c.l.b16 %v443
        %v886 = vunpack.c.l.b16 %v444
        %v887 = vunpack.c.l.b16 %v445
        %v888 = vunpack.c.l.b16 %v446
        %v889 = vunpack.c.l.b16 %v447
        %v890 = vunpack.c.l.b16 %v448
        %v891 = vunpack.c.l.b16 %v449
        %v892 = vunpack.c.l.b16 %v450
        %v893 = vunpack.c.l.b16 %v451
        %v894 = vunpack.c.l.b16 %v452
        %v895 = vunpack.c.l.b16 %v453
        %v896 = vpack.c.b16 %v833, %v832
        %v897 = vpack.c.b16 %v835, %v834
        %v898 = vpack.c.b16 %v837, %v836
        %v899 = vpack.c.b16 %v839, %v838
        %v900 = vpack.c.b16 %v841, %v840
        %v901 = vpack.c.b16 %v843, %v842
        %v902 = vpack.c.b16 %v845, %v844
        %v903 = vpack.c.b16 %v847, %v846
        %v904 = vpack.c.b16 %v849, %v848
        %v905 = vpack.c.b16 %v851, %v850
        %v906 = vpack.c.b16 %v853, %v852
        %v907 = vpack.c.b16 %v855, %v854
        %v908 = vpack.c.b16 %v857, %v856
        %v909 = vpack.c.b16 %v859, %v858
        %v910 = vpack.c.b16 %v861, %v860
        %v911 = vpack.c.b16 %v863, %v862
        %v912 = vpack.c.b16 %v865, %v864
        %v913 = vpack.c.b16 %v867, %v866
        %v914 = vpack.c.b16 %v869, %v868
        %v915 = vpack.c.b16 %v871, %v870
        %v916 = vpack.c.b16 %v873, %v872
        %v917 = vpack.c.b16 %v875, %v874
        %v918 = vpack.c.b16 %v877, %v876
        %v919 = vpack.c.b16 %v879, %v878
        %v920 = vpack.c.b16 %v881, %v880
        %v921 = vpack.c.b16 %v883, %v882
        %v922 = vpack.c.b16 %v885, %v884
        %v923 = vpack.c.b16 %v887, %v886
        %v924 = vpack.c.b16 %v889, %v888
        %v925 = vpack.c.b16 %v891, %v890
        %v926 = vpack.c.b16 %v893, %v892
        %v927 = vpack.c.b16 %v895, %v894
        %960 = vmatprep.subr.bf16.mxu0 0
        %961 = vmatpush1.bf16.msra.mxu0 %v896
        %962 = vmatprep.subr.bf16.mxu0 0
        %963 = vmatpush1.bf16.msra.mxu0 %v897
        %964 = vmatprep.subr.bf16.mxu0 0
        %965 = vmatpush1.bf16.msra.mxu0 %v898
        %966 = vmatprep.subr.bf16.mxu0 0
        %967 = vmatpush1.bf16.msra.mxu0 %v899
        %968 = vmatprep.subr.bf16.mxu0 0
        %969 = vmatpush1.bf16.msra.mxu0 %v900
        %970 = vmatprep.subr.bf16.mxu0 0
        %971 = vmatpush1.bf16.msra.mxu0 %v901
        %972 = vmatprep.subr.bf16.mxu0 0
        %973 = vmatpush1.bf16.msra.mxu0 %v902
        %974 = vmatprep.subr.bf16.mxu0 0
        %975 = vmatpush1.bf16.msra.mxu0 %v903
        %976 = vmatprep.subr.bf16.mxu0 0
        %977 = vmatpush1.bf16.msra.mxu0 %v904
        %978 = vmatprep.subr.bf16.mxu0 0
        %979 = vmatpush1.bf16.msra.mxu0 %v905
        %980 = vmatprep.subr.bf16.mxu0 0
        %981 = vmatpush1.bf16.msra.mxu0 %v906
        %982 = vmatprep.subr.bf16.mxu0 0
        %983 = vmatpush1.bf16.msra.mxu0 %v907
        %984 = vmatprep.subr.bf16.mxu0 0
        %985 = vmatpush1.bf16.msra.mxu0 %v908
        %986 = vmatprep.subr.bf16.mxu0 0
        %987 = vmatpush1.bf16.msra.mxu0 %v909
        %988 = vmatprep.subr.bf16.mxu0 0
        %989 = vmatpush1.bf16.msra.mxu0 %v910
        %990 = vmatprep.subr.bf16.mxu0 0
        %991 = vmatpush1.bf16.msra.mxu0 %v911
        %992 = vmatprep.mubr.bf16.mxu0 %v761
        %993 = vmatmul.mubr.bf16.gmra.mrb[0].mxu0 %v760
        %v994 = vpop.f32.mrb[0].mxu0
        %v995 = vadd.f32 %v742, %v994
        %v996 = vpop.f32.mrb[0].mxu0
        %v997 = vpop.f32.mrb[0].mxu0
        %v998 = vadd.f32 %v745, %v997
        %v999 = vpop.f32.mrb[0].mxu0
        %1000 = vdwg.mxu0
        %1001 = vmatprep.subr.bf16.mxu0 0
        %1002 = vmatpush1.bf16.msra.mxu0 %v912
        %1003 = vmatprep.subr.bf16.mxu0 0
        %1004 = vmatpush1.bf16.msra.mxu0 %v913
        %1005 = vmatprep.subr.bf16.mxu0 0
        %1006 = vmatpush1.bf16.msra.mxu0 %v914
        %1007 = vmatprep.subr.bf16.mxu0 0
        %1008 = vmatpush1.bf16.msra.mxu0 %v915
        %1009 = vmatprep.subr.bf16.mxu0 0
        %1010 = vmatpush1.bf16.msra.mxu0 %v916
        %1011 = vmatprep.subr.bf16.mxu0 0
        %1012 = vmatpush1.bf16.msra.mxu0 %v917
        %1013 = vmatprep.subr.bf16.mxu0 0
        %1014 = vmatpush1.bf16.msra.mxu0 %v918
        %1015 = vmatprep.subr.bf16.mxu0 0
        %1016 = vmatpush1.bf16.msra.mxu0 %v919
        %1017 = vmatprep.subr.bf16.mxu0 0
        %1018 = vmatpush1.bf16.msra.mxu0 %v920
        %1019 = vmatprep.subr.bf16.mxu0 0
        %1020 = vmatpush1.bf16.msra.mxu0 %v921
        %1021 = vmatprep.subr.bf16.mxu0 0
        %1022 = vmatpush1.bf16.msra.mxu0 %v922
        %1023 = vmatprep.subr.bf16.mxu0 0
        %1024 = vmatpush1.bf16.msra.mxu0 %v923
        %1025 = vmatprep.subr.bf16.mxu0 0
        %1026 = vmatpush1.bf16.msra.mxu0 %v924
        %1027 = vmatprep.subr.bf16.mxu0 0
        %1028 = vmatpush1.bf16.msra.mxu0 %v925
        %1029 = vmatprep.subr.bf16.mxu0 0
        %1030 = vmatpush1.bf16.msra.mxu0 %v926
        %1031 = vmatprep.subr.bf16.mxu0 0
        %1032 = vmatpush1.bf16.msra.mxu0 %v927
        %1033 = vmatprep.mubr.bf16.mxu0 %v763
        %1034 = vmatmul.mubr.bf16.gmra.mrb[0].mxu0 %v762
        %v1035 = vpop.f32.mrb[0].mxu0
        %v1036 = vadd.f32 %v995, %v1035
        %v1037 = vpop.f32.mrb[0].mxu0
        %v1038 = vpop.f32.mrb[0].mxu0
        %v1039 = vadd.f32 %v998, %v1038
        %v1040 = vpop.f32.mrb[0].mxu0
        %1041 = vdwg.mxu0
        %v1042 = vld [vmem:[%s4] sm:$0x1]
        %v1044 = vlaneseq
        %v1045 = vshrl.u32 %v1044, 7
        %v1046 = vsub.s32 0, %v1045
        %v1047 = vrot.slane %v1042, %v1046
        %v1049 = vadd.f32 %v1036, %v1047
        %v1050 = vadd.f32 %v1039, %v1047
        %vm1051 = vcmp.gt.f32.partialorder %v1049, 0.0
        %vm1052 = vcmp.gt.f32.partialorder %v1050, 0.0
        %v1053 = vmul.f32 %v1049, 0.01
        %v1054 = vmul.f32 %v1050, 0.01
        %v1055 = vsel %vm1051, %v1049, %v1053
        %v1056 = vsel %vm1052, %v1050, %v1054
        %v1057 = vpack.c.bf16 %v1056, %v1055
        %v1058 = vld [vmem:[#allocation10] sm:$0xf]
        %v1059 = vld [vmem:[#allocation10 + $0x4] sm:$0xf]
        %v1060 = vld [vmem:[#allocation10 + $0x8] sm:$0xf]
        %v1061 = vld [vmem:[#allocation10 + $0xc] sm:$0xf]
        %v1062 = vld [vmem:[#allocation10 + $0x10] sm:$0xf]
        %v1063 = vld [vmem:[#allocation10 + $0x14] sm:$0xf]
        %v1064 = vld [vmem:[#allocation10 + $0x18] sm:$0xf]
        %v1065 = vld [vmem:[#allocation10 + $0x1c] sm:$0xf]
        %v1066 = vld [vmem:[#allocation10 + $0x20] sm:$0xf]
        %v1067 = vld [vmem:[#allocation10 + $0x24] sm:$0xf]
        %v1068 = vld [vmem:[#allocation10 + $0x28] sm:$0xf]
        %v1069 = vld [vmem:[#allocation10 + $0x2c] sm:$0xf]
        %v1070 = vld [vmem:[#allocation10 + $0x30] sm:$0xf]
        %v1071 = vld [vmem:[#allocation10 + $0x34] sm:$0xf]
        %v1072 = vld [vmem:[#allocation10 + $0x38] sm:$0xf]
        %v1073 = vld [vmem:[#allocation10 + $0x3c] sm:$0xf]
        %v1074 = vld [vmem:[%s6] sm:$0x1]
        %v1076 = vlaneseq
        %v1077 = vshrl.u32 %v1076, 7
        %v1078 = vsub.s32 0, %v1077
        %v1079 = vrot.slane %v1074, %v1078
        %v1097 = vunpack.c.l.b16 %v1058
        %v1098 = vunpack.c.l.b16 %v1059
        %v1099 = vunpack.c.l.b16 %v1060
        %v1100 = vunpack.c.l.b16 %v1061
        %v1101 = vunpack.c.l.b16 %v1062
        %v1102 = vunpack.c.l.b16 %v1063
        %v1103 = vunpack.c.l.b16 %v1064
        %v1104 = vunpack.c.l.b16 %v1065
        %v1105 = vunpack.c.l.b16 %v1066
        %v1106 = vunpack.c.l.b16 %v1067
        %v1107 = vunpack.c.l.b16 %v1068
        %v1108 = vunpack.c.l.b16 %v1069
        %v1109 = vunpack.c.l.b16 %v1070
        %v1110 = vunpack.c.l.b16 %v1071
        %v1111 = vunpack.c.l.b16 %v1072
        %v1112 = vunpack.c.l.b16 %v1073
        %v1113 = vpack.c.b16 %v1098, %v1097
        %v1114 = vpack.c.b16 %v1100, %v1099
        %v1115 = vpack.c.b16 %v1102, %v1101
        %v1116 = vpack.c.b16 %v1104, %v1103
        %v1117 = vpack.c.b16 %v1106, %v1105
        %v1118 = vpack.c.b16 %v1108, %v1107
        %v1119 = vpack.c.b16 %v1110, %v1109
        %v1120 = vpack.c.b16 %v1112, %v1111
        %1129 = vmatprep.subr.bf16.mxu0 0
        %1130 = vmatpush1.bf16.msra.mxu0 %v1113
        %1131 = vmatprep.subr.bf16.mxu0 0
        %1132 = vmatpush1.bf16.msra.mxu0 %v1114
        %1133 = vmatprep.subr.bf16.mxu0 0
        %1134 = vmatpush1.bf16.msra.mxu0 %v1115
        %1135 = vmatprep.subr.bf16.mxu0 0
        %1136 = vmatpush1.bf16.msra.mxu0 %v1116
        %1137 = vmatprep.subr.bf16.mxu0 0
        %1138 = vmatpush1.bf16.msra.mxu0 %v1117
        %1139 = vmatprep.subr.bf16.mxu0 0
        %1140 = vmatpush1.bf16.msra.mxu0 %v1118
        %1141 = vmatprep.subr.bf16.mxu0 0
        %1142 = vmatpush1.bf16.msra.mxu0 %v1119
        %1143 = vmatprep.subr.bf16.mxu0 0
        %1144 = vmatpush1.bf16.msra.mxu0 %v1120
        %1145 = vmatprep.subr.bf16.mxu0 0
        %1146 = vmatpush1.bf16.msra.mxu0 0
        %1147 = vmatprep.subr.bf16.mxu0 0
        %1148 = vmatpush1.bf16.msra.mxu0 0
        %1149 = vmatprep.subr.bf16.mxu0 0
        %1150 = vmatpush1.bf16.msra.mxu0 0
        %1151 = vmatprep.subr.bf16.mxu0 0
        %1152 = vmatpush1.bf16.msra.mxu0 0
        %1153 = vmatprep.subr.bf16.mxu0 0
        %1154 = vmatpush1.bf16.msra.mxu0 0
        %1155 = vmatprep.subr.bf16.mxu0 0
        %1156 = vmatpush1.bf16.msra.mxu0 0
        %1157 = vmatprep.subr.bf16.mxu0 0
        %1158 = vmatpush1.bf16.msra.mxu0 0
        %1159 = vmatprep.subr.bf16.mxu0 0
        %1160 = vmatpush1.bf16.msra.mxu0 0
        %1161 = vmatprep.mubr.bf16.mxu0 0
        %1162 = vmatmul.mubr.bf16.gmra.mrb[0].mxu0 %v1057
        %v1163 = vpop.f32.mrb[0].mxu0
        %v1164 = vadd.f32 %v1079, %v1163
        %v1165 = vpop.f32.mrb[0].mxu0
        %v1166 = vpop.f32.mrb[0].mxu0
        %v1167 = vadd.f32 %v1079, %v1166
        %v1168 = vpop.f32.mrb[0].mxu0
        %1169 = vdwg.mxu0
        %vm1170 = vcmp.gt.f32.partialorder %v1164, 0.0
        %vm1171 = vcmp.gt.f32.partialorder %v1167, 0.0
        %v1172 = vmul.f32 %v1164, 0.01
        %v1173 = vmul.f32 %v1167, 0.01
        %v1174 = vsel %vm1170, %v1164, %v1172
        %v1175 = vsel %vm1171, %v1167, %v1173
        %1176 = vst [vmem:[%s381] sm:$0xff] %v1174
        %1177 = vst [vmem:[%s381 + $0x8] sm:$0xff] %v1175
        %s1178 = sand.u32 %s193, 1
        %s1179 = scalar_lea.sflag [#allocation4], %s1178
        %s1180 = sand.u32 %s193, 1
        %s1181 = smul.addr %s1180, 16
        %s1182 = scalar_lea.vmem [#allocation11], %s1181
        // Predicated region
        $region69: #{tpu_custom_call.1} parent=47 // pred_check
          %p1183 = pneg %p203
        $region70: #{tpu_custom_call.1} parent=47 // pred_check_branch
          %1185 = sbr.rel (%p1183) target = $region72
        $region71: #{tpu_custom_call.1} parent=47 // pred_region
          %s1186 = smul.u32 2, %s28
          %s1188 = ssub.s32 256, 256
          %1189 = vsyncadd %s1179, %s1188
          %s1190 = smul.addr %s1186, 128
          %s1191 = scalar_lea.hbm %s7, %s1190
          %s1192 = sshll.u32 %s1182, 4
          %s1193 = int_to_ptr.vmem [resolvable:$true] %s1192
          %1198 = dma.vmem_to_hbm [thread:$0]  %s1193, 256, %s1191, %s1179, 128, 128, 8
        $region72: #{tpu_custom_call.1} parent=47 // pred_fallthru
          _
      $region48: #{tpu_custom_call.1} parent=5 // pred_fallthru
        _
      %p1199 = scmp.le.s32.totalorder 2, %s23
      // Predicated region
      $region73: #{tpu_custom_call.1} parent=5 // pred_check
        %p1200 = pneg %p1199
      $region74: #{tpu_custom_call.1} parent=5 // pred_check_branch
        %1202 = sbr.rel (%p1200) target = $region76
      $region75: #{tpu_custom_call.1} parent=5 // pred_region
        %s1203 = ssub.s32 %s23, 2
        // Predicated region
        $region77: #{tpu_custom_call.1} parent=75 // pred_check
          %p1204 = pneg %p209
        $region78: #{tpu_custom_call.1} parent=75 // pred_check_branch
          %1206 = sbr.rel (%p1204) target = $region80
        $region79: #{tpu_custom_call.1} parent=75 // pred_region
          %s1207 = sand.u32 %s194, 1
          %s1208 = scalar_lea.sflag [#allocation4], %s1207
          %s1209 = sand.u32 %s194, 1
          %s1210 = smul.addr %s1209, 16
          %s1211 = scalar_lea.vmem [#allocation11], %s1210
          %1212 = dma.done %s1208, 256
        $region80: #{tpu_custom_call.1} parent=75 // pred_fallthru
          _
      $region76: #{tpu_custom_call.1} parent=5 // pred_fallthru
        _
    $region6: #{tpu_custom_call.1} parent=1 // loop_footer
      %s27 = sadd.s32 1, %s23
    $region7: #{tpu_custom_call.1} parent=1 // loop_footer_branch
      %22 = sbr.rel target = $region3
    $region8: #{tpu_custom_call.1} parent=1 // loop_exit
      _
    %1213 = vsyncpa [#allocation3], 1
    %s1214 = scalar_lea.sflag [#allocation3], 1
    %1215 = vsyncpa %s1214, 1
    %1216 = vsyncpa [#allocation6], 1
    %s1217 = scalar_lea.sflag [#allocation6], 1
    %1218 = vsyncpa %s1217, 1
    %1219 = vsyncpa [#allocation9], 1
    %1220 = vsyncpa [#allocation4], 1
    %s1221 = scalar_lea.sflag [#allocation4], 1
    %1222 = vsyncpa %s1221, 1

</llo_original>
